<compile_context>
chip_gen: v5e
topology: v5e:2x2
jax: 0.10.0
libtpu: 0.0.40
codegen_flags: <defaults>
</compile_context>

<pallas_src>
import math

import jax
import jax.numpy as jnp
from jax.experimental import pallas as pl
from jax.experimental.pallas import tpu as pltpu


def _round_up(x, m):
    return ((x + m - 1) // m) * m


# ----------------------------------------------------------------------------
# Kernel 1: (dead-softmax) attention + output projection + residual + LayerNorm
# ----------------------------------------------------------------------------
def _attn_res_ln_kernel(src_ref, q_ref, wv_ref, wo_ref, bo_ref, g_ref, b_ref,
                        o_ref):
    # Per-sample block: src_ref [Lsrc, E], q_ref [Lq, E], weights [E, E],
    # bias / layernorm rows [1, E].
    #
    # torch.einsum('nhqk,nvhd->nqhd', softmax(energy), V) contracts k and v
    # independently; since softmax sums to 1 over k, the result is
    # sum_over_Lsrc(V(src)) broadcast over Lq.  By linearity we sum src first.
    src_sum = jnp.sum(src_ref[...].astype(jnp.float32), axis=0, keepdims=True)  # [1, E]
    a = jnp.dot(src_sum, wv_ref[...].astype(jnp.float32),
                preferred_element_type=jnp.float32)                             # [1, E]
    a = jnp.dot(a, wo_ref[...].astype(jnp.float32),
                preferred_element_type=jnp.float32) + bo_ref[...].astype(jnp.float32)
    y = q_ref[...].astype(jnp.float32) + a                                       # [Lq, E]
    mean = jnp.mean(y, axis=-1, keepdims=True)
    var = jnp.mean((y - mean) ** 2, axis=-1, keepdims=True)
    inv = jax.lax.rsqrt(var + 1e-5)
    o_ref[...] = ((y - mean) * inv * g_ref[...].astype(jnp.float32)
                  + b_ref[...].astype(jnp.float32)).astype(o_ref.dtype)


def attn_residual_layernorm(src, queries, wv, wo, bo, ln_g, ln_b):
    """Fused SelfAttention(values=src) + residual(queries) + LayerNorm.

    src:     [N, Lsrc, E]   (the `values` input of SelfAttention)
    queries: [N, Lq, E]     (query / residual stream)
    returns: [N, Lq, E]
    """
    N, Lsrc, E = src.shape
    _, Lq, _ = queries.shape
    return pl.pallas_call(
        _attn_res_ln_kernel,
        grid=(N,),
        in_specs=[
            pl.BlockSpec((None, Lsrc, E), lambda n: (n, 0, 0)),
            pl.BlockSpec((None, Lq, E), lambda n: (n, 0, 0)),
            pl.BlockSpec((E, E), lambda n: (0, 0)),
            pl.BlockSpec((E, E), lambda n: (0, 0)),
            pl.BlockSpec((1, E), lambda n: (0, 0)),
            pl.BlockSpec((1, E), lambda n: (0, 0)),
            pl.BlockSpec((1, E), lambda n: (0, 0)),
        ],
        out_specs=pl.BlockSpec((None, Lq, E), lambda n: (n, 0, 0)),
        out_shape=jax.ShapeDtypeStruct((N, Lq, E), jnp.float32),
        compiler_params=pltpu.CompilerParams(dimension_semantics=("parallel",)),
    )(src, queries, wv, wo, bo.reshape(1, E), ln_g.reshape(1, E),
      ln_b.reshape(1, E))


# ----------------------------------------------------------------------------
# Kernel 2: FF1(ReLU) -> FF2 -> +skip -> LayerNorm (fused feed-forward block)
# ----------------------------------------------------------------------------
def _ffn_res_ln_kernel(x_ref, w1_ref, b1_ref, w2_ref, b2_ref, g_ref, b_ref,
                       o_ref):
    x = x_ref[...].astype(jnp.float32)                                           # [tm, E]
    h = jnp.dot(x, w1_ref[...].astype(jnp.float32),
                preferred_element_type=jnp.float32) + b1_ref[...].astype(jnp.float32)
    h = jnp.maximum(h, 0.0)
    y = jnp.dot(h, w2_ref[...].astype(jnp.float32),
                preferred_element_type=jnp.float32) + b2_ref[...].astype(jnp.float32) + x
    mean = jnp.mean(y, axis=-1, keepdims=True)
    var = jnp.mean((y - mean) ** 2, axis=-1, keepdims=True)
    inv = jax.lax.rsqrt(var + 1e-5)
    o_ref[...] = ((y - mean) * inv * g_ref[...].astype(jnp.float32)
                  + b_ref[...].astype(jnp.float32)).astype(o_ref.dtype)


def ffn_residual_layernorm(x, w1, b1, w2, b2, ln_g, ln_b, *, tm_pref=256):
    """x: [M, E] -> LayerNorm(FF2(ReLU(FF1(x))) + x), tiled over rows."""
    M, E = x.shape
    H = w1.shape[1]
    Mp = _round_up(M, 8)
    if Mp != M:
        x = jnp.pad(x, ((0, Mp - M), (0, 0)))
    tm = math.gcd(Mp, tm_pref)
    out = pl.pallas_call(
        _ffn_res_ln_kernel,
        grid=(Mp // tm,),
        in_specs=[
            pl.BlockSpec((tm, E), lambda i: (i, 0)),
            pl.BlockSpec((E, H), lambda i: (0, 0)),
            pl.BlockSpec((1, H), lambda i: (0, 0)),
            pl.BlockSpec((H, E), lambda i: (0, 0)),
            pl.BlockSpec((1, E), lambda i: (0, 0)),
            pl.BlockSpec((1, E), lambda i: (0, 0)),
            pl.BlockSpec((1, E), lambda i: (0, 0)),
        ],
        out_specs=pl.BlockSpec((tm, E), lambda i: (i, 0)),
        out_shape=jax.ShapeDtypeStruct((Mp, E), jnp.float32),
        compiler_params=pltpu.CompilerParams(dimension_semantics=("parallel",)),
    )(x, w1, b1.reshape(1, H), w2, b2.reshape(1, E), ln_g.reshape(1, E),
      ln_b.reshape(1, E))
    return out[:M]


# ----------------------------------------------------------------------------
# Kernel 3: tiled, lane-dense linear for the final vocab projection
# ----------------------------------------------------------------------------
def _linear_kernel(x_ref, w_ref, b_ref, o_ref):
    y = jnp.dot(x_ref[...].astype(jnp.float32), w_ref[...].astype(jnp.float32),
                preferred_element_type=jnp.float32) + b_ref[...].astype(jnp.float32)
    o_ref[...] = y.astype(o_ref.dtype)


def linear_tiled(x, w, b, *, tm_pref=256, tn_pref=512):
    """x[M,K] @ w[K,Nout] + b, with M padded to a multiple of 8 and Nout padded
    to a multiple of 128 so output stores are full-lane (no masked partials).
    Padding is sliced off before returning."""
    M, K = x.shape
    _, Nout = w.shape
    Mp = _round_up(M, 8)
    Np = _round_up(Nout, 128)
    if Mp != M:
        x = jnp.pad(x, ((0, Mp - M), (0, 0)))
    if Np != Nout:
        w = jnp.pad(w, ((0, 0), (0, Np - Nout)))
        b = jnp.pad(b, ((0, Np - Nout),))
    tm = math.gcd(Mp, tm_pref)
    tn = math.gcd(Np, tn_pref)
    out = pl.pallas_call(
        _linear_kernel,
        grid=(Mp // tm, Np // tn),
        in_specs=[
            pl.BlockSpec((tm, K), lambda i, j: (i, 0)),
            pl.BlockSpec((K, tn), lambda i, j: (0, j)),
            pl.BlockSpec((1, tn), lambda i, j: (0, j)),
        ],
        out_specs=pl.BlockSpec((tm, tn), lambda i, j: (i, j)),
        out_shape=jax.ShapeDtypeStruct((Mp, Np), jnp.float32),
        compiler_params=pltpu.CompilerParams(
            dimension_semantics=("parallel", "parallel")),
    )(x, w, b.reshape(1, Np))
    return out[:M, :Nout]


# ----------------------------------------------------------------------------
# Model glue (embedding lookup + per-layer kernel calls)
# ----------------------------------------------------------------------------
def decoder_block_forward(p, x, encoder_out):
    N, L, E = x.shape
    # Self-attention + residual + LayerNorm (DecoderBlock.norm); dropout = id.
    q = attn_residual_layernorm(
        x, x,
        p["self_attn"]["wv"], p["self_attn"]["wo"], p["self_attn"]["bo"],
        p["ln_g"], p["ln_b"])
    tb = p["tblock"]
    # Cross-attention (values/keys = encoder_out) + residual + norm1.
    skip = attn_residual_layernorm(
        encoder_out, q,
        tb["attn"]["wv"], tb["attn"]["wo"], tb["attn"]["bo"],
        tb["ln1_g"], tb["ln1_b"])
    # Feed-forward + residual + norm2.
    out = ffn_residual_layernorm(
        skip.reshape(N * L, E),
        tb["ff1_w"], tb["ff1_b"], tb["ff2_w"], tb["ff2_b"],
        tb["ln2_g"], tb["ln2_b"]).reshape(N, L, E)
    return out


def decoder_forward(params, x_tokens, encoder_out):
    N, L = x_tokens.shape
    E = params["word_emb"].shape[1]
    positions = jnp.arange(L, dtype=jnp.int32)
    # TODO(synk): embedding gather stays in plain JAX (jnp.take); a Pallas DMA
    # gather is not warranted at these sizes.
    x = jnp.take(params["word_emb"], x_tokens, axis=0) + \
        jnp.take(params["pos_emb"], positions, axis=0)[None, :, :]
    # dropout: identity (eval mode)
    for lp in params["layers"]:
        x = decoder_block_forward(lp, x, encoder_out)
    V = params["fc_w"].shape[1]
    out = linear_tiled(x.reshape(N * L, E), params["fc_w"], params["fc_b"])
    return out.reshape(N, L, V)


# ----------------------------------------------------------------------------
# Deterministic parameter init (torch-style shapes; weights stored [in, out])
# ----------------------------------------------------------------------------
def _init_linear(key, fan_in, fan_out, bias=True):
    kw, kb = jax.random.split(key)
    bound = 1.0 / (fan_in ** 0.5)
    w = jax.random.uniform(kw, (fan_in, fan_out), jnp.float32, -bound, bound)
    b = (jax.random.uniform(kb, (fan_out,), jnp.float32, -bound, bound)
         if bias else jnp.zeros((fan_out,), jnp.float32))
    return w, b


def _init_self_attention(key, E):
    ks = jax.random.split(key, 4)
    wv, _ = _init_linear(ks[0], E, E, bias=False)
    # wk / wq are kept for structural fidelity but are mathematically dead:
    # the module's buggy einsum makes the output independent of q, k, softmax.
    wk, _ = _init_linear(ks[1], E, E, bias=False)
    wq, _ = _init_linear(ks[2], E, E, bias=False)
    wo, bo = _init_linear(ks[3], E, E, bias=True)
    return {"wv": wv, "wk": wk, "wq": wq, "wo": wo, "bo": bo}


def _init_transformer_block(key, E, fe):
    ks = jax.random.split(key, 3)
    ff1_w, ff1_b = _init_linear(ks[1], E, fe * E)
    ff2_w, ff2_b = _init_linear(ks[2], fe * E, E)
    return {
        "attn": _init_self_attention(ks[0], E),
        "ln1_g": jnp.ones((E,), jnp.float32), "ln1_b": jnp.zeros((E,), jnp.float32),
        "ff1_w": ff1_w, "ff1_b": ff1_b,
        "ff2_w": ff2_w, "ff2_b": ff2_b,
        "ln2_g": jnp.ones((E,), jnp.float32), "ln2_b": jnp.zeros((E,), jnp.float32),
    }


def _init_decoder_block(key, E, fe):
    k1, k2 = jax.random.split(key)
    return {
        "self_attn": _init_self_attention(k1, E),
        "ln_g": jnp.ones((E,), jnp.float32), "ln_b": jnp.zeros((E,), jnp.float32),
        "tblock": _init_transformer_block(k2, E, fe),
    }


def init_decoder(key, vocab, E, num_layers, fe, max_len):
    ks = jax.random.split(key, num_layers + 3)
    word_emb = jax.random.normal(ks[0], (vocab, E), jnp.float32)
    pos_emb = jax.random.normal(ks[1], (max_len, E), jnp.float32)
    layers = [_init_decoder_block(ks[2 + i], E, fe) for i in range(num_layers)]
    fc_w, fc_b = _init_linear(ks[-1], E, vocab)
    return {"word_emb": word_emb, "pos_emb": pos_emb, "layers": layers,
            "fc_w": fc_w, "fc_b": fc_b}


# ----------------------------------------------------------------------------
if __name__ == "__main__":
    # small config consistent with Decoder(__init__)
    vocab_size = 50
    embed_size = 32
    num_layers = 2
    heads = 4                       # divides embed_size; collapsed analytically
    forward_expansion = 2
    max_len = 16
    N, seq_len, enc_len = 2, 8, 8
    assert embed_size % heads == 0

    key = jax.random.PRNGKey(0)
    kp, kx, ke = jax.random.split(key, 3)

    params = init_decoder(kp, vocab_size, embed_size, num_layers,
                          forward_expansion, max_len)
    x_tokens = jax.random.randint(kx, (N, seq_len), 0, vocab_size, jnp.int32)
    encoder_out = jax.random.normal(ke, (N, enc_len, embed_size), jnp.float32)

    out = decoder_forward(params, x_tokens, encoder_out)
    out = jax.block_until_ready(out)
    assert out.shape == (N, seq_len, vocab_size)
    assert jnp.all(jnp.isfinite(out))
    print("KERNEL_OK")
</pallas_src>

<mosaic_0001>
module attributes {stable_mosaic.version = 11 : i64} {
  func.func @_attn_res_ln_kernel(%arg0: i32, %arg1: memref<1x8x32xf32, #tpu.memory_space<vmem>>, %arg2: memref<1x8x32xf32, #tpu.memory_space<vmem>>, %arg3: memref<32x32xf32, #tpu.memory_space<vmem>>, %arg4: memref<32x32xf32, #tpu.memory_space<vmem>>, %arg5: memref<1x32xf32, #tpu.memory_space<vmem>>, %arg6: memref<1x32xf32, #tpu.memory_space<vmem>>, %arg7: memref<1x32xf32, #tpu.memory_space<vmem>>, %arg8: memref<1x8x32xf32, #tpu.memory_space<vmem>>) attributes {dimension_semantics = [#tpu.dimension_semantics<parallel>], iteration_bounds = array<i64: 2>, scalar_prefetch = 0 : i64, scratch_operands = 0 : i64, tpu.core_type = #tpu.core_type<tc>, window_params = [{transform_indices = @transform_0, window_bounds = array<i64: 1, 8, 32>}, {transform_indices = @transform_1, window_bounds = array<i64: 1, 8, 32>}, {pipeline_mode = #tpu.pipeline_mode<synchronous>, transform_indices = @transform_2, window_bounds = array<i64: 32, 32>}, {pipeline_mode = #tpu.pipeline_mode<synchronous>, transform_indices = @transform_3, window_bounds = array<i64: 32, 32>}, {pipeline_mode = #tpu.pipeline_mode<synchronous>, transform_indices = @transform_4, window_bounds = array<i64: 1, 32>}, {pipeline_mode = #tpu.pipeline_mode<synchronous>, transform_indices = @transform_5, window_bounds = array<i64: 1, 32>}, {pipeline_mode = #tpu.pipeline_mode<synchronous>, transform_indices = @transform_6, window_bounds = array<i64: 1, 32>}, {transform_indices = @transform_7, window_bounds = array<i64: 1, 8, 32>}]} {
    %c0 = arith.constant 0 : index
    %c0_0 = arith.constant 0 : index
    %c0_1 = arith.constant 0 : index
    %0 = vector.load %arg1[%c0, %c0_0, %c0_1] : memref<1x8x32xf32, #tpu.memory_space<vmem>>, vector<1x8x32xf32>
    %1 = vector.shape_cast %0 : vector<1x8x32xf32> to vector<8x32xf32>
    %cst = arith.constant dense<0.000000e+00> : vector<32xf32>
    %2 = vector.multi_reduction <add>, %1, %cst [0] : vector<8x32xf32> to vector<32xf32>
    %3 = vector.shape_cast %2 : vector<32xf32> to vector<1x32xf32>
    %c0_2 = arith.constant 0 : index
    %c0_3 = arith.constant 0 : index
    %4 = vector.load %arg3[%c0_2, %c0_3] : memref<32x32xf32, #tpu.memory_space<vmem>>, vector<32x32xf32>
    %cst_4 = arith.constant dense<0.000000e+00> : vector<1x32xf32>
    %5 = tpu.matmul %3, %4, %cst_4 {dimension_numbers = #tpu.dot_dimension_numbers<[1], [0], [0], [1], [0, 0, 1, 1], [], []>} : vector<1x32xf32>, vector<32x32xf32>, vector<1x32xf32> -> vector<1x32xf32>
    %c0_5 = arith.constant 0 : index
    %c0_6 = arith.constant 0 : index
    %6 = vector.load %arg4[%c0_5, %c0_6] : memref<32x32xf32, #tpu.memory_space<vmem>>, vector<32x32xf32>
    %cst_7 = arith.constant dense<0.000000e+00> : vector<1x32xf32>
    %7 = tpu.matmul %5, %6, %cst_7 {dimension_numbers = #tpu.dot_dimension_numbers<[1], [0], [0], [1], [0, 0, 1, 1], [], []>} : vector<1x32xf32>, vector<32x32xf32>, vector<1x32xf32> -> vector<1x32xf32>
    %c0_8 = arith.constant 0 : index
    %c0_9 = arith.constant 0 : index
    %8 = vector.load %arg5[%c0_8, %c0_9] : memref<1x32xf32, #tpu.memory_space<vmem>>, vector<1x32xf32>
    %9 = arith.addf %7, %8 : vector<1x32xf32>
    %c0_10 = arith.constant 0 : index
    %c0_11 = arith.constant 0 : index
    %c0_12 = arith.constant 0 : index
    %10 = vector.load %arg2[%c0_10, %c0_11, %c0_12] : memref<1x8x32xf32, #tpu.memory_space<vmem>>, vector<1x8x32xf32>
    %11 = vector.shape_cast %10 : vector<1x8x32xf32> to vector<8x32xf32>
    %12 = vector.broadcast %9 : vector<1x32xf32> to vector<8x32xf32>
    %13 = arith.addf %11, %12 : vector<8x32xf32>
    %cst_13 = arith.constant dense<0.000000e+00> : vector<8xf32>
    %14 = vector.multi_reduction <add>, %13, %cst_13 [1] : vector<8x32xf32> to vector<8xf32>
    %15 = vector.shape_cast %14 : vector<8xf32> to vector<8x1xf32>
    %cst_14 = arith.constant 3.200000e+01 : f32
    %16 = vector.broadcast %cst_14 : f32 to vector<8x1xf32>
    %17 = arith.divf %15, %16 : vector<8x1xf32>
    %18 = vector.broadcast %17 : vector<8x1xf32> to vector<8x32xf32>
    %19 = arith.subf %13, %18 : vector<8x32xf32>
    %20 = arith.mulf %19, %19 : vector<8x32xf32>
    %cst_15 = arith.constant dense<0.000000e+00> : vector<8xf32>
    %21 = vector.multi_reduction <add>, %20, %cst_15 [1] : vector<8x32xf32> to vector<8xf32>
    %22 = vector.shape_cast %21 : vector<8xf32> to vector<8x1xf32>
    %cst_16 = arith.constant 3.200000e+01 : f32
    %23 = vector.broadcast %cst_16 : f32 to vector<8x1xf32>
    %24 = arith.divf %22, %23 : vector<8x1xf32>
    %cst_17 = arith.constant 9.99999974E-6 : f32
    %25 = vector.broadcast %cst_17 : f32 to vector<8x1xf32>
    %26 = arith.addf %24, %25 : vector<8x1xf32>
    %27 = math.rsqrt %26 : vector<8x1xf32>
    %28 = vector.broadcast %17 : vector<8x1xf32> to vector<8x32xf32>
    %29 = arith.subf %13, %28 : vector<8x32xf32>
    %30 = vector.broadcast %27 : vector<8x1xf32> to vector<8x32xf32>
    %31 = arith.mulf %29, %30 : vector<8x32xf32>
    %c0_18 = arith.constant 0 : index
    %c0_19 = arith.constant 0 : index
    %32 = vector.load %arg6[%c0_18, %c0_19] : memref<1x32xf32, #tpu.memory_space<vmem>>, vector<1x32xf32>
    %33 = vector.broadcast %32 : vector<1x32xf32> to vector<8x32xf32>
    %34 = arith.mulf %31, %33 : vector<8x32xf32>
    %c0_20 = arith.constant 0 : index
    %c0_21 = arith.constant 0 : index
    %35 = vector.load %arg7[%c0_20, %c0_21] : memref<1x32xf32, #tpu.memory_space<vmem>>, vector<1x32xf32>
    %36 = vector.broadcast %35 : vector<1x32xf32> to vector<8x32xf32>
    %37 = arith.addf %34, %36 : vector<8x32xf32>
    %c0_22 = arith.constant 0 : index
    %c0_23 = arith.constant 0 : index
    %c0_24 = arith.constant 0 : index
    %38 = vector.load %arg8[%c0_22, %c0_23, %c0_24] : memref<1x8x32xf32, #tpu.memory_space<vmem>>, vector<1x8x32xf32>
    %39 = vector.shape_cast %38 : vector<1x8x32xf32> to vector<8x32xf32>
    %40 = vector.shape_cast %37 : vector<8x32xf32> to vector<1x8x32xf32>
    tpu.vector_store %arg8[%c0_22, %c0_23, %c0_24], %40 {strides = array<i32>} : memref<1x8x32xf32, #tpu.memory_space<vmem>>, vector<1x8x32xf32>,
    return
  }
  func.func @transform_0(%arg0: i32) -> (i32, i32, i32) {
    %c0_i32 = arith.constant 0 : i32
    %c0_i32_0 = arith.constant 0 : i32
    %c0_i32_1 = arith.constant 0 : i32
    return %arg0, %c0_i32, %c0_i32_0 : i32, i32, i32
  }
  func.func @transform_1(%arg0: i32) -> (i32, i32, i32) {
    %c0_i32 = arith.constant 0 : i32
    %c0_i32_0 = arith.constant 0 : i32
    %c0_i32_1 = arith.constant 0 : i32
    return %arg0, %c0_i32, %c0_i32_0 : i32, i32, i32
  }
  func.func @transform_2(%arg0: i32) -> (i32, i32) {
    %c0_i32 = arith.constant 0 : i32
    %c0_i32_0 = arith.constant 0 : i32
    %c0_i32_1 = arith.constant 0 : i32
    return %c0_i32, %c0_i32_0 : i32, i32
  }
  func.func @transform_3(%arg0: i32) -> (i32, i32) {
    %c0_i32 = arith.constant 0 : i32
    %c0_i32_0 = arith.constant 0 : i32
    %c0_i32_1 = arith.constant 0 : i32
    return %c0_i32, %c0_i32_0 : i32, i32
  }
  func.func @transform_4(%arg0: i32) -> (i32, i32) {
    %c0_i32 = arith.constant 0 : i32
    %c0_i32_0 = arith.constant 0 : i32
    %c0_i32_1 = arith.constant 0 : i32
    return %c0_i32, %c0_i32_0 : i32, i32
  }
  func.func @transform_5(%arg0: i32) -> (i32, i32) {
    %c0_i32 = arith.constant 0 : i32
    %c0_i32_0 = arith.constant 0 : i32
    %c0_i32_1 = arith.constant 0 : i32
    return %c0_i32, %c0_i32_0 : i32, i32
  }
  func.func @transform_6(%arg0: i32) -> (i32, i32) {
    %c0_i32 = arith.constant 0 : i32
    %c0_i32_0 = arith.constant 0 : i32
    %c0_i32_1 = arith.constant 0 : i32
    return %c0_i32, %c0_i32_0 : i32, i32
  }
  func.func @transform_7(%arg0: i32) -> (i32, i32, i32) {
    %c0_i32 = arith.constant 0 : i32
    %c0_i32_0 = arith.constant 0 : i32
    %c0_i32_1 = arith.constant 0 : i32
    return %arg0, %c0_i32, %c0_i32_0 : i32, i32, i32
  }
}

</mosaic_0001>

<llo_original>
// kernel: tpu_custom_call.1
$region0: #{tpu_custom_call.1}
  #allocation0 [shape = 'u32[]', space=smem, size = 0x4, offset = 0x4, fixed_abs, tag = 'smem constant byte address 0x4 - core index']
  #allocation1 [shape = 'u32[72,128]{1,0:T(1,128)}', space=vmem, size = 0x9000, scoped, tag = 'internal scratch']
  %s0 = inlined_call_operand.hbm [shape: f32[2,8,32], index: 0, kind: input, shape index: {}]
  %s1 = inlined_call_operand.hbm [shape: f32[2,8,32], index: 1, kind: input, shape index: {}]
  %s2 = inlined_call_operand.hbm [shape: f32[32,32], index: 2, kind: input, shape index: {}]
  %s3 = inlined_call_operand.hbm [shape: f32[32,32], index: 3, kind: input, shape index: {}]
  %s4 = inlined_call_operand.vmem [shape: f32[1,32], index: 4, kind: input, shape index: {}]
  %s5 = inlined_call_operand.vmem [shape: f32[1,32], index: 5, kind: input, shape index: {}]
  %s6 = inlined_call_operand.vmem [shape: f32[1,32], index: 6, kind: input, shape index: {}]
  %s7 = inlined_call_operand.hbm [shape: f32[2,8,32], index: 7, kind: output, shape index: {}]
  %s8 = sld [smem:[#allocation0]]
  $region77: #{tpu_custom_call.1} parent=0
    _
  %s10 = ssub.s32 1, %s8
  %s11 = scalar_select 0, %s10, %s8
  $region1: #{tpu_custom_call.1} parent=0
    #allocation2 [shape = 'u8[8192]{0}', space=vmem, size = 0x2000, scoped, tag = 'input window, operand 0']
    #allocation3 [shape = 's32[2]{0}', space=sflag, size = 0x8, scoped, tag = 'scoped memory for tpu_custom_call.1']
    #allocation4 [shape = 's32[2]{0}', space=sflag, size = 0x8, scoped, tag = 'scoped memory for tpu_custom_call.1']
    #allocation5 [shape = 'u8[8192]{0}', space=vmem, size = 0x2000, scoped, tag = 'input window, operand 1']
    #allocation6 [shape = 's32[2]{0}', space=sflag, size = 0x8, scoped, tag = 'scoped memory for tpu_custom_call.1']
    #allocation7 [shape = 'u8[16384]{0}', space=vmem, size = 0x4000, scoped, tag = 'input window, operand 2, single buffered']
    #allocation8 [shape = 'u8[16384]{0}', space=vmem, size = 0x4000, scoped, tag = 'input window, operand 3, single buffered']
    #allocation9 [shape = 's32[1]{0}', space=sflag, size = 0x4, scoped, tag = 'scoped memory for tpu_custom_call.1']
    #allocation10 [shape = 'u8[8192]{0}', space=vmem, size = 0x2000, scoped, tag = 'output window, operand 0']
    %12 = vsyncpa [#allocation3], 0
    %s13 = scalar_lea.sflag [#allocation3], 1
    %14 = vsyncpa %s13, 0
    %15 = vsyncpa [#allocation6], 0
    %s16 = scalar_lea.sflag [#allocation6], 1
    %17 = vsyncpa %s16, 0
    %18 = vsyncpa [#allocation9], 0
    %19 = vsyncpa [#allocation4], 0
    %s20 = scalar_lea.sflag [#allocation4], 1
    %21 = vsyncpa %s20, 0
    loop: start=0, step=1, limit=4
    $region2: #{tpu_custom_call.1} parent=1 // loop_pre_header
      _
    $region3: #{tpu_custom_call.1} parent=1 // loop_header
      %s23 = sphi 0, %s27
      %p24 = scmp.ge.s32.totalorder %s23, 4
      %s33 = sphi 0, %s35
      %s36 = sphi 0, %s33
      %s37 = sphi 0, %s36
      %s53 = sphi 0, %s37
      %s59 = sphi 0, %s61
      %s62 = sphi 0, %s59
      %s63 = sphi 0, %s62
      %s79 = sphi 0, %s63
      %s83 = sphi 0, %s83
      %s85 = sphi 0, %s83
      %s86 = sphi 0, %s85
      %s100 = sphi 0, %s86
      %s104 = sphi 0, %s104
      %s106 = sphi 0, %s104
      %s107 = sphi 0, %s106
      %s121 = sphi 0, %s107
      %s125 = sphi 0, %s125
      %s127 = sphi 0, %s125
      %s128 = sphi 0, %s127
      %s142 = sphi 0, %s128
      %s146 = sphi 0, %s146
      %s148 = sphi 0, %s146
      %s149 = sphi 0, %s148
      %s163 = sphi 0, %s149
      %s167 = sphi 0, %s167
      %s169 = sphi 0, %s167
      %s170 = sphi 0, %s169
      %s184 = sphi 0, %s170
      %s190 = sphi 0, %s192
      %s193 = sphi 0, %s190
      %s194 = sphi 0, %s193
      %s210 = sphi 0, %s194
    $region4: #{tpu_custom_call.1} parent=1 // loop_header_branch
      %26 = sbr.rel (%p24) target = $region8
    $region5: #{tpu_custom_call.1} parent=1 // loop_body
      %s28 = ssub.s32 %s23, 1
      %s29 = ssub.s32 %s23, 2
      %s30 = sadd.s32 %s23, 1
      %s31 = ssub.s32 %s23, %s30
      %p32 = scmp.eq.s32.totalorder %s31, 0
      %s34 = sadd.s32 %s33, 1
      %s35 = scalar_select %p32, %s33, %s34
      %p38 = pneg %p32
      %p39 = scmp.eq.s32.totalorder %s23, 1
      %p40 = por %p38, %p39
      %p41 = scmp.ne.s32.totalorder %s33, %s36
      %p42 = scmp.eq.s32.totalorder %s23, 0
      %p43 = por %p41, %p42
      %p44 = scmp.ne.s32.totalorder %s33, %s36
      %p45 = scmp.eq.s32.totalorder %s28, 1
      %p46 = por %p44, %p45
      %p47 = scmp.ne.s32.totalorder %s36, %s37
      %p48 = scmp.eq.s32.totalorder %s28, 0
      %p49 = por %p47, %p48
      %p50 = scmp.ne.s32.totalorder %s36, %s37
      %p51 = scmp.eq.s32.totalorder %s29, 1
      %p52 = por %p50, %p51
      %p54 = scmp.ne.s32.totalorder %s37, %s53
      %p55 = scmp.eq.s32.totalorder %s29, 0
      %p56 = por %p54, %p55
      %s57 = ssub.s32 %s23, %s30
      %p58 = scmp.eq.s32.totalorder %s57, 0
      %s60 = sadd.s32 %s59, 1
      %s61 = scalar_select %p58, %s59, %s60
      %p64 = pneg %p58
      %p65 = scmp.eq.s32.totalorder %s23, 1
      %p66 = por %p64, %p65
      %p67 = scmp.ne.s32.totalorder %s59, %s62
      %p68 = scmp.eq.s32.totalorder %s23, 0
      %p69 = por %p67, %p68
      %p70 = scmp.ne.s32.totalorder %s59, %s62
      %p71 = scmp.eq.s32.totalorder %s28, 1
      %p72 = por %p70, %p71
      %p73 = scmp.ne.s32.totalorder %s62, %s63
      %p74 = scmp.eq.s32.totalorder %s28, 0
      %p75 = por %p73, %p74
      %p76 = scmp.ne.s32.totalorder %s62, %s63
      %p77 = scmp.eq.s32.totalorder %s29, 1
      %p78 = por %p76, %p77
      %p80 = scmp.ne.s32.totalorder %s63, %s79
      %p81 = scmp.eq.s32.totalorder %s29, 0
      %p82 = por %p80, %p81
      %s84 = sadd.s32 %s83, 1
      %p87 = scmp.eq.s32.totalorder %s23, 1
      %p88 = scmp.ne.s32.totalorder %s83, %s85
      %p89 = scmp.eq.s32.totalorder %s23, 0
      %p90 = por %p88, %p89
      %p91 = scmp.ne.s32.totalorder %s83, %s85
      %p92 = scmp.eq.s32.totalorder %s28, 1
      %p93 = por %p91, %p92
      %p94 = scmp.ne.s32.totalorder %s85, %s86
      %p95 = scmp.eq.s32.totalorder %s28, 0
      %p96 = por %p94, %p95
      %p97 = scmp.ne.s32.totalorder %s85, %s86
      %p98 = scmp.eq.s32.totalorder %s29, 1
      %p99 = por %p97, %p98
      %p101 = scmp.ne.s32.totalorder %s86, %s100
      %p102 = scmp.eq.s32.totalorder %s29, 0
      %p103 = por %p101, %p102
      %s105 = sadd.s32 %s104, 1
      %p108 = scmp.eq.s32.totalorder %s23, 1
      %p109 = scmp.ne.s32.totalorder %s104, %s106
      %p110 = scmp.eq.s32.totalorder %s23, 0
      %p111 = por %p109, %p110
      %p112 = scmp.ne.s32.totalorder %s104, %s106
      %p113 = scmp.eq.s32.totalorder %s28, 1
      %p114 = por %p112, %p113
      %p115 = scmp.ne.s32.totalorder %s106, %s107
      %p116 = scmp.eq.s32.totalorder %s28, 0
      %p117 = por %p115, %p116
      %p118 = scmp.ne.s32.totalorder %s106, %s107
      %p119 = scmp.eq.s32.totalorder %s29, 1
      %p120 = por %p118, %p119
      %p122 = scmp.ne.s32.totalorder %s107, %s121
      %p123 = scmp.eq.s32.totalorder %s29, 0
      %p124 = por %p122, %p123
      %s126 = sadd.s32 %s125, 1
      %p129 = scmp.eq.s32.totalorder %s23, 1
      %p130 = scmp.ne.s32.totalorder %s125, %s127
      %p131 = scmp.eq.s32.totalorder %s23, 0
      %p132 = por %p130, %p131
      %p133 = scmp.ne.s32.totalorder %s125, %s127
      %p134 = scmp.eq.s32.totalorder %s28, 1
      %p135 = por %p133, %p134
      %p136 = scmp.ne.s32.totalorder %s127, %s128
      %p137 = scmp.eq.s32.totalorder %s28, 0
      %p138 = por %p136, %p137
      %p139 = scmp.ne.s32.totalorder %s127, %s128
      %p140 = scmp.eq.s32.totalorder %s29, 1
      %p141 = por %p139, %p140
      %p143 = scmp.ne.s32.totalorder %s128, %s142
      %p144 = scmp.eq.s32.totalorder %s29, 0
      %p145 = por %p143, %p144
      %s147 = sadd.s32 %s146, 1
      %p150 = scmp.eq.s32.totalorder %s23, 1
      %p151 = scmp.ne.s32.totalorder %s146, %s148
      %p152 = scmp.eq.s32.totalorder %s23, 0
      %p153 = por %p151, %p152
      %p154 = scmp.ne.s32.totalorder %s146, %s148
      %p155 = scmp.eq.s32.totalorder %s28, 1
      %p156 = por %p154, %p155
      %p157 = scmp.ne.s32.totalorder %s148, %s149
      %p158 = scmp.eq.s32.totalorder %s28, 0
      %p159 = por %p157, %p158
      %p160 = scmp.ne.s32.totalorder %s148, %s149
      %p161 = scmp.eq.s32.totalorder %s29, 1
      %p162 = por %p160, %p161
      %p164 = scmp.ne.s32.totalorder %s149, %s163
      %p165 = scmp.eq.s32.totalorder %s29, 0
      %p166 = por %p164, %p165
      %s168 = sadd.s32 %s167, 1
      %p171 = scmp.eq.s32.totalorder %s23, 1
      %p172 = scmp.ne.s32.totalorder %s167, %s169
      %p173 = scmp.eq.s32.totalorder %s23, 0
      %p174 = por %p172, %p173
      %p175 = scmp.ne.s32.totalorder %s167, %s169
      %p176 = scmp.eq.s32.totalorder %s28, 1
      %p177 = por %p175, %p176
      %p178 = scmp.ne.s32.totalorder %s169, %s170
      %p179 = scmp.eq.s32.totalorder %s28, 0
      %p180 = por %p178, %p179
      %p181 = scmp.ne.s32.totalorder %s169, %s170
      %p182 = scmp.eq.s32.totalorder %s29, 1
      %p183 = por %p181, %p182
      %p185 = scmp.ne.s32.totalorder %s170, %s184
      %p186 = scmp.eq.s32.totalorder %s29, 0
      %p187 = por %p185, %p186
      %s188 = ssub.s32 %s23, %s30
      %p189 = scmp.eq.s32.totalorder %s188, 0
      %s191 = sadd.s32 %s190, 1
      %s192 = scalar_select %p189, %s190, %s191
      %p195 = pneg %p189
      %p196 = scmp.eq.s32.totalorder %s23, 1
      %p197 = por %p195, %p196
      %p198 = scmp.ne.s32.totalorder %s190, %s193
      %p199 = scmp.eq.s32.totalorder %s23, 0
      %p200 = por %p198, %p199
      %p201 = scmp.ne.s32.totalorder %s190, %s193
      %p202 = scmp.eq.s32.totalorder %s28, 1
      %p203 = por %p201, %p202
      %p204 = scmp.ne.s32.totalorder %s193, %s194
      %p205 = scmp.eq.s32.totalorder %s28, 0
      %p206 = por %p204, %p205
      %p207 = scmp.ne.s32.totalorder %s193, %s194
      %p208 = scmp.eq.s32.totalorder %s29, 1
      %p209 = por %p207, %p208
      %p211 = scmp.ne.s32.totalorder %s194, %s210
      %p212 = scmp.eq.s32.totalorder %s29, 0
      %p213 = por %p211, %p212
      %p214 = scmp.le.s32.totalorder 1, %s23
      %p215 = scmp.lt.s32.totalorder %s23, 3
      %p216 = pnand %p214, %p215
      %p217 = pneg %p216
      // Predicated region
      $region9: #{tpu_custom_call.1} parent=5 // pred_check
        _
      $region10: #{tpu_custom_call.1} parent=5 // pred_check_branch
        %219 = sbr.rel (%p216) target = $region12
      $region11: #{tpu_custom_call.1} parent=5 // pred_region
        %s220 = ssub.s32 %s23, 1
        // Predicated region
        $region13: #{tpu_custom_call.1} parent=11 // pred_check
          %p221 = pneg %p96
        $region14: #{tpu_custom_call.1} parent=11 // pred_check_branch
          %223 = sbr.rel (%p221) target = $region16
        $region15: #{tpu_custom_call.1} parent=11 // pred_region
          %225 = vsyncadd [#allocation6], 0
          %s226 = sshll.u32 %s2, 4
          %s227 = int_to_ptr.hbm [resolvable:$true] %s226
          %s228 = sshll.u32 [#allocation7], 4
          %s229 = int_to_ptr.vmem [resolvable:$true] %s228
          %234 = dma.hbm_to_vmem [thread:$0]  %s227, 512, %s229, [#allocation6], 128, 128, 8
        $region16: #{tpu_custom_call.1} parent=11 // pred_fallthru
          _
        // Predicated region
        $region17: #{tpu_custom_call.1} parent=11 // pred_check
          %p235 = pneg %p117
        $region18: #{tpu_custom_call.1} parent=11 // pred_check_branch
          %237 = sbr.rel (%p235) target = $region20
        $region19: #{tpu_custom_call.1} parent=11 // pred_region
          %239 = vsyncadd [#allocation9], 0
          %s240 = sshll.u32 %s3, 4
          %s241 = int_to_ptr.hbm [resolvable:$true] %s240
          %s242 = sshll.u32 [#allocation8], 4
          %s243 = int_to_ptr.vmem [resolvable:$true] %s242
          %248 = dma.hbm_to_vmem [thread:$0]  %s241, 512, %s243, [#allocation9], 128, 128, 8
        $region20: #{tpu_custom_call.1} parent=11 // pred_fallthru
          _
        // Predicated region
        $region21: #{tpu_custom_call.1} parent=11 // pred_check
          %p249 = pneg %p138
        $region22: #{tpu_custom_call.1} parent=11 // pred_check_branch
          %251 = sbr.rel (%p249) target = $region24
        $region23: #{tpu_custom_call.1} parent=11 // pred_region
          _
        $region24: #{tpu_custom_call.1} parent=11 // pred_fallthru
          _
        // Predicated region
        $region25: #{tpu_custom_call.1} parent=11 // pred_check
          %p252 = pneg %p159
        $region26: #{tpu_custom_call.1} parent=11 // pred_check_branch
          %254 = sbr.rel (%p252) target = $region28
        $region27: #{tpu_custom_call.1} parent=11 // pred_region
          _
        $region28: #{tpu_custom_call.1} parent=11 // pred_fallthru
          _
        // Predicated region
        $region29: #{tpu_custom_call.1} parent=11 // pred_check
          %p255 = pneg %p180
        $region30: #{tpu_custom_call.1} parent=11 // pred_check_branch
          %257 = sbr.rel (%p255) target = $region32
        $region31: #{tpu_custom_call.1} parent=11 // pred_region
          _
        $region32: #{tpu_custom_call.1} parent=11 // pred_fallthru
          _
      $region12: #{tpu_custom_call.1} parent=5 // pred_fallthru
        _
      %p258 = scmp.lt.s32.totalorder %s23, 2
      // Predicated region
      $region33: #{tpu_custom_call.1} parent=5 // pred_check
        %p259 = pneg %p258
      $region34: #{tpu_custom_call.1} parent=5 // pred_check_branch
        %261 = sbr.rel (%p259) target = $region36
      $region35: #{tpu_custom_call.1} parent=5 // pred_region
        // Predicated region
        $region37: #{tpu_custom_call.1} parent=35 // pred_check
          %p262 = pneg %p43
        $region38: #{tpu_custom_call.1} parent=35 // pred_check_branch
          %264 = sbr.rel (%p262) target = $region40
        $region39: #{tpu_custom_call.1} parent=35 // pred_region
          %s265 = sand.u32 %s33, 1
          %s266 = scalar_lea.sflag [#allocation3], %s265
          %s267 = sand.u32 %s33, 1
          %s268 = smul.addr %s267, 8
          %s269 = scalar_lea.vmem [#allocation2], %s268
          %271 = vsyncadd %s266, 0
          %s272 = smul.addr %s23, 8
          %s273 = scalar_lea.hbm %s0, %s272
          %s275 = sshll.u32 %s273, 4
          %s276 = int_to_ptr.hbm [resolvable:$true] %s275
          %s277 = sshll.u32 %s269, 4
          %s278 = int_to_ptr.vmem [resolvable:$true] %s277
          %280 = dma.hbm_to_vmem [thread:$0]  %s276, 128, %s278, %s266
        $region40: #{tpu_custom_call.1} parent=35 // pred_fallthru
          _
        // Predicated region
        $region41: #{tpu_custom_call.1} parent=35 // pred_check
          %p281 = pneg %p69
        $region42: #{tpu_custom_call.1} parent=35 // pred_check_branch
          %283 = sbr.rel (%p281) target = $region44
        $region43: #{tpu_custom_call.1} parent=35 // pred_region
          %s284 = sand.u32 %s23, 1
          %s285 = scalar_lea.sflag [#allocation6], %s284
          %s286 = sand.u32 %s59, 1
          %s287 = smul.addr %s286, 8
          %s288 = scalar_lea.vmem [#allocation5], %s287
          %290 = vsyncadd %s285, 0
          %s291 = smul.addr %s23, 8
          %s292 = scalar_lea.hbm %s1, %s291
          %s294 = sshll.u32 %s292, 4
          %s295 = int_to_ptr.hbm [resolvable:$true] %s294
          %s296 = sshll.u32 %s288, 4
          %s297 = int_to_ptr.vmem [resolvable:$true] %s296
          %299 = dma.hbm_to_vmem [thread:$0]  %s295, 128, %s297, %s285
        $region44: #{tpu_custom_call.1} parent=35 // pred_fallthru
          _
      $region36: #{tpu_custom_call.1} parent=5 // pred_fallthru
        _
      %p300 = scmp.le.s32.totalorder 1, %s23
      %p301 = scmp.lt.s32.totalorder %s23, 3
      %p302 = pnand %p300, %p301
      %p303 = pneg %p302
      // Predicated region
      $region45: #{tpu_custom_call.1} parent=5 // pred_check
        _
      $region46: #{tpu_custom_call.1} parent=5 // pred_check_branch
        %305 = sbr.rel (%p302) target = $region48
      $region47: #{tpu_custom_call.1} parent=5 // pred_region
        %s306 = ssub.s32 %s23, 1
        %s307 = sand.u32 %s36, 1
        %s308 = scalar_lea.sflag [#allocation3], %s307
        %s309 = sand.u32 %s36, 1
        %s310 = smul.addr %s309, 8
        %s311 = scalar_lea.vmem [#allocation2], %s310
        // Predicated region
        $region49: #{tpu_custom_call.1} parent=47 // pred_check
          %p312 = pneg %p49
        $region50: #{tpu_custom_call.1} parent=47 // pred_check_branch
          %314 = sbr.rel (%p312) target = $region52
        $region51: #{tpu_custom_call.1} parent=47 // pred_region
          %316 = dma.done %s308, 128
        $region52: #{tpu_custom_call.1} parent=47 // pred_fallthru
          _
        %s317 = sand.u32 %s28, 1
        %s318 = scalar_lea.sflag [#allocation6], %s317
        %s319 = sand.u32 %s62, 1
        %s320 = smul.addr %s319, 8
        %s321 = scalar_lea.vmem [#allocation5], %s320
        // Predicated region
        $region53: #{tpu_custom_call.1} parent=47 // pred_check
          %p322 = pneg %p75
        $region54: #{tpu_custom_call.1} parent=47 // pred_check_branch
          %324 = sbr.rel (%p322) target = $region56
        $region55: #{tpu_custom_call.1} parent=47 // pred_region
          %326 = dma.done %s318, 128
        $region56: #{tpu_custom_call.1} parent=47 // pred_fallthru
          _
        // Predicated region
        $region57: #{tpu_custom_call.1} parent=47 // pred_check
          %p327 = pneg %p96
        $region58: #{tpu_custom_call.1} parent=47 // pred_check_branch
          %329 = sbr.rel (%p327) target = $region60
        $region59: #{tpu_custom_call.1} parent=47 // pred_region
          %331 = dma.done [#allocation6], 512
        $region60: #{tpu_custom_call.1} parent=47 // pred_fallthru
          _
        // Predicated region
        $region61: #{tpu_custom_call.1} parent=47 // pred_check
          %p332 = pneg %p117
        $region62: #{tpu_custom_call.1} parent=47 // pred_check_branch
          %334 = sbr.rel (%p332) target = $region64
        $region63: #{tpu_custom_call.1} parent=47 // pred_region
          %336 = dma.done [#allocation9], 512
        $region64: #{tpu_custom_call.1} parent=47 // pred_fallthru
          _
        %s337 = sand.u32 %s36, 1
        %s338 = scalar_lea.sflag [#allocation3], %s337
        %s339 = sand.u32 %s36, 1
        %s340 = smul.addr %s339, 8
        %s341 = scalar_lea.vmem [#allocation2], %s340
        %p342 = pneg %p49
        %p343 = pneg %p46
        %s344 = sand.u32 %s28, 1
        %s345 = scalar_lea.sflag [#allocation6], %s344
        %s346 = sand.u32 %s62, 1
        %s347 = smul.addr %s346, 8
        %s348 = scalar_lea.vmem [#allocation5], %s347
        %p349 = pneg %p75
        %p350 = pneg %p72
        %p351 = pneg %p96
        %p352 = pneg %p93
        %p353 = pneg %p117
        %p354 = pneg %p114
        %p355 = pneg %p138
        %p356 = pneg %p135
        %p357 = pneg %p159
        %p358 = pneg %p156
        %p359 = pneg %p180
        %p360 = pneg %p177
        %p361 = pneg %p206
        %p362 = pneg %p203
        %s363 = sand.u32 %s193, 1
        %s364 = scalar_lea.sflag [#allocation4], %s363
        %s365 = sand.u32 %s193, 1
        %s366 = smul.addr %s365, 8
        %s367 = scalar_lea.vmem [#allocation10], %s366
        %v368 = vld [vmem:[%s311] sm:$0xff]
        %vm369 = vcmask 261120
        %v370 = vsel %vm369, %v368, 0.0
        %v371 = vrot.slane %v370, 4
        %v372 = vadd.f32 %v370, %v371
        %v373 = vrot.slane %v372, 2
        %v374 = vadd.f32 %v372, %v373
        %v375 = vrot.slane %v374, 1
        %v376 = vadd.f32 %v374, %v375
        %v377 = vld [vmem:[#allocation7] sm:$0xff]
        %v378 = vld [vmem:[#allocation7 + $0x8] sm:$0xff]
        %v379 = vld [vmem:[#allocation7 + $0x10] sm:$0xff]
        %v380 = vld [vmem:[#allocation7 + $0x18] sm:$0xff]
        %v382 = vsel %vm369, %v376, 0
        %384 = vmatpush.msra.mxu0 0.0
        %385 = vmatpush.msra.mxu0 0.0
        %386 = vmatpush.msra.mxu0 0.0
        %387 = vmatpush.msra.mxu0 0.0
        %388 = vmatpush.msra.mxu0 0.0
        %389 = vmatpush.msra.mxu0 0.0
        %390 = vmatpush.msra.mxu0 0.0
        %391 = vmatpush.msra.mxu0 0.0
        %392 = vmatpush.msra.mxu0 0.0
        %393 = vmatpush.msra.mxu0 0.0
        %394 = vmatpush.msra.mxu0 0.0
        %395 = vmatpush.msra.mxu0 0.0
        %396 = vmatpush.msra.mxu0 %v380
        %397 = vmatpush.msra.mxu0 %v379
        %398 = vmatpush.msra.mxu0 %v378
        %399 = vmatpush.msra.mxu0 %v377
        %400 = vmatmul.f32.gmra.mxu0 %v382
        %v401 = vpop.f32.mrf.mxu0
        %v402 = vadd.f32 0.0, %v401
        %403 = vdwg.mxu0
        %v404 = vld [vmem:[#allocation8] sm:$0xff]
        %v405 = vld [vmem:[#allocation8 + $0x8] sm:$0xff]
        %v406 = vld [vmem:[#allocation8 + $0x10] sm:$0xff]
        %v407 = vld [vmem:[#allocation8 + $0x18] sm:$0xff]
        %v408 = vld [vmem:[%s4] sm:$0x1]
        %v410 = vsel %vm369, %v402, 0
        %412 = vmatpush.msra.mxu0 0.0
        %413 = vmatpush.msra.mxu0 0.0
        %414 = vmatpush.msra.mxu0 0.0
        %415 = vmatpush.msra.mxu0 0.0
        %416 = vmatpush.msra.mxu0 0.0
        %417 = vmatpush.msra.mxu0 0.0
        %418 = vmatpush.msra.mxu0 0.0
        %419 = vmatpush.msra.mxu0 0.0
        %420 = vmatpush.msra.mxu0 0.0
        %421 = vmatpush.msra.mxu0 0.0
        %422 = vmatpush.msra.mxu0 0.0
        %423 = vmatpush.msra.mxu0 0.0
        %424 = vmatpush.msra.mxu0 %v407
        %425 = vmatpush.msra.mxu0 %v406
        %426 = vmatpush.msra.mxu0 %v405
        %427 = vmatpush.msra.mxu0 %v404
        %428 = vmatmul.f32.gmra.mxu0 %v410
        %v429 = vpop.f32.mrf.mxu0
        %v430 = vadd.f32 %v408, %v429
        %431 = vdwg.mxu0
        %v432 = vld [vmem:[%s321] sm:$0xff]
        %v433 = vperm.slane %v430, 0
        %v434 = vadd.f32 %v432, %v433
        %v435 = vsel %vm369, %v434, 0.0
        %436 = vadd.xlane.f32.xlu0 %v435
        %v437 = vpop.xlane.xlu0 %436
        %v438 = vrcp.pop 32.0
        %v439 = vmul.f32 32.0, %v438
        %v440 = vsub.f32 1.0, %v439
        %v441 = vmul.f32 %v438, %v440
        %v442 = vadd.f32 %v438, %v441
        %vm443 = vweird.f32 %v438
        %v444 = vsel %vm443, %v438, %v442
        %v445 = vmul.f32 %v437, %v444
        %v446 = vsub.f32 %v434, %v445
        %v447 = vmul.f32 %v446, %v446
        %v448 = vsel %vm369, %v447, 0.0
        %449 = vadd.xlane.f32.xlu0 %v448
        %v450 = vpop.xlane.xlu0 %449
        %v451 = vmul.f32 %v450, %v444
        %v452 = vadd.f32 %v451, 1e-05
        %v453 = vrsqrt.pop %v452
        %v454 = vmul.f32 %v453, %v452
        %v455 = vmul.f32 %v454, %v453
        %v456 = vmul.f32 0.5, %v455
        %v457 = vsub.f32 1.5, %v456
        %v458 = vmul.f32 %v453, %v457
        %vm459 = vweird.f32 %v452
        %vm460 = vweird.f32 %v453
        %vm461 = vmor %vm459, %vm460
        %v462 = vsel %vm461, %v453, %v458
        %v463 = vmul.f32 %v446, %v462
        %v464 = vld [vmem:[%s5] sm:$0x1]
        %v466 = vperm.slane %v464, 0
        %v468 = vmul.f32 %v463, %v466
        %v469 = vld [vmem:[%s6] sm:$0x1]
        %v471 = vperm.slane %v469, 0
        %v473 = vadd.f32 %v468, %v471
        %474 = vst.msk [vmem:[%s367] sm:$0xff] %vm369, %v473
        %s475 = sand.u32 %s193, 1
        %s476 = scalar_lea.sflag [#allocation4], %s475
        %s477 = sand.u32 %s193, 1
        %s478 = smul.addr %s477, 8
        %s479 = scalar_lea.vmem [#allocation10], %s478
        // Predicated region
        $region65: #{tpu_custom_call.1} parent=47 // pred_check
          %p480 = pneg %p203
        $region66: #{tpu_custom_call.1} parent=47 // pred_check_branch
          %482 = sbr.rel (%p480) target = $region68
        $region67: #{tpu_custom_call.1} parent=47 // pred_region
          %484 = vsyncadd %s476, 0
          %s485 = smul.addr %s28, 8
          %s486 = scalar_lea.hbm %s7, %s485
          %s488 = sshll.u32 %s479, 4
          %s489 = int_to_ptr.vmem [resolvable:$true] %s488
          %s490 = sshll.u32 %s486, 4
          %s491 = int_to_ptr.hbm [resolvable:$true] %s490
          %493 = dma.vmem_to_hbm [thread:$0]  %s489, 128, %s491, %s476
        $region68: #{tpu_custom_call.1} parent=47 // pred_fallthru
          _
      $region48: #{tpu_custom_call.1} parent=5 // pred_fallthru
        _
      %p494 = scmp.le.s32.totalorder 2, %s23
      // Predicated region
      $region69: #{tpu_custom_call.1} parent=5 // pred_check
        %p495 = pneg %p494
      $region70: #{tpu_custom_call.1} parent=5 // pred_check_branch
        %497 = sbr.rel (%p495) target = $region72
      $region71: #{tpu_custom_call.1} parent=5 // pred_region
        %s498 = ssub.s32 %s23, 2
        // Predicated region
        $region73: #{tpu_custom_call.1} parent=71 // pred_check
          %p499 = pneg %p209
        $region74: #{tpu_custom_call.1} parent=71 // pred_check_branch
          %501 = sbr.rel (%p499) target = $region76
        $region75: #{tpu_custom_call.1} parent=71 // pred_region
          %s502 = sand.u32 %s194, 1
          %s503 = scalar_lea.sflag [#allocation4], %s502
          %s504 = sand.u32 %s194, 1
          %s505 = smul.addr %s504, 8
          %s506 = scalar_lea.vmem [#allocation10], %s505
          %508 = dma.done %s503, 128
        $region76: #{tpu_custom_call.1} parent=71 // pred_fallthru
          _
      $region72: #{tpu_custom_call.1} parent=5 // pred_fallthru
        _
    $region6: #{tpu_custom_call.1} parent=1 // loop_footer
      %s27 = sadd.s32 1, %s23
    $region7: #{tpu_custom_call.1} parent=1 // loop_footer_branch
      %22 = sbr.rel target = $region3
    $region8: #{tpu_custom_call.1} parent=1 // loop_exit
      _
    %509 = vsyncpa [#allocation3], 1
    %s510 = scalar_lea.sflag [#allocation3], 1
    %511 = vsyncpa %s510, 1
    %512 = vsyncpa [#allocation6], 1
    %s513 = scalar_lea.sflag [#allocation6], 1
    %514 = vsyncpa %s513, 1
    %515 = vsyncpa [#allocation9], 1
    %516 = vsyncpa [#allocation4], 1
    %s517 = scalar_lea.sflag [#allocation4], 1
    %518 = vsyncpa %s517, 1

</llo_original>
